<compile_context>
chip_gen: v7x
topology: tpu7x:2x2x1
jax: 0.10.0
libtpu: 0.0.40
codegen_flags: <defaults>
</compile_context>

<pallas_src>
import functools

import jax
import jax.numpy as jnp
from jax.experimental import pallas as pl
from jax.experimental.pallas import tpu as pltpu

EPS = 1e-5
_VMEM_LIMIT = 48 * 1024 * 1024   # < 64 MiB physical on v7x; plenty on v5e/v6e


def _round_up(a, m):
    return -(-a // m) * m


def _bn_affine(sum_v, sq_v, gamma, beta, count):
    """Fold training-mode (biased) BN into per-channel scale/shift: y = h*a + c."""
    mean = sum_v / count
    var = jnp.maximum(sq_v / count - mean * mean, 0.0)
    a = gamma * jax.lax.rsqrt(var + EPS)
    c = beta - mean * a
    return a, c


# --------------------------------------------------------------------------
# pass 1: per-tile partial sum / sumsq of conv_1 output (BN1 statistics)
# --------------------------------------------------------------------------
def stats1_kernel(x_ref, w1_ref, sum_ref, sq_ref):
    h1 = jnp.dot(x_ref[...], w1_ref[...], preferred_element_type=jnp.float32)
    sum_ref[...] = jnp.sum(h1, axis=0, keepdims=True)[None]
    sq_ref[...] = jnp.sum(h1 * h1, axis=0, keepdims=True)[None]


# --------------------------------------------------------------------------
# pass 2: recompute conv_1 (BN1-folded weights), ReLU, conv_2 -> BN2 stats
# --------------------------------------------------------------------------
def stats2_kernel(x_ref, w1a_ref, c1_ref, w2_ref, sum_ref, sq_ref,
                  *, tile_rows, total_rows, need_mask):
    h1 = jnp.dot(x_ref[...], w1a_ref[...], preferred_element_type=jnp.float32)
    a1 = jnp.maximum(h1 + c1_ref[...], 0.0)
    if need_mask:
        ridx = (pl.program_id(0) * tile_rows
                + jax.lax.broadcasted_iota(jnp.int32, (tile_rows, 1), 0))
        a1 = jnp.where(ridx < total_rows, a1, 0.0)   # padded rows -> h2 == 0
    h2 = jnp.dot(a1.astype(jnp.bfloat16), w2_ref[...],
                 preferred_element_type=jnp.float32)
    sum_ref[...] = jnp.sum(h2, axis=0, keepdims=True)[None]
    sq_ref[...] = jnp.sum(h2 * h2, axis=0, keepdims=True)[None]


# --------------------------------------------------------------------------
# pass 3: recompute conv_1/conv_2 (BN-folded), conv_3; accumulate BN3 stats
#         (per-batch partials) and running per-batch max/min of pre-BN conv_3
# --------------------------------------------------------------------------
def conv3_pool_kernel(x_ref, w1a_ref, c1_ref, w2a_ref, c2_ref, w3_ref,
                      sum_ref, sq_ref, max_ref, min_ref,
                      *, tile_n, total_n, need_mask):
    t = pl.program_id(1)

    x = x_ref[0]                                                  # (TN, Cp) bf16
    h1 = jnp.dot(x, w1a_ref[...], preferred_element_type=jnp.float32)
    a1 = jnp.maximum(h1 + c1_ref[...], 0.0)
    h2 = jnp.dot(a1.astype(jnp.bfloat16), w2a_ref[...],
                 preferred_element_type=jnp.float32)
    a2 = jnp.maximum(h2 + c2_ref[...], 0.0)
    if need_mask:
        pidx = (t * tile_n
                + jax.lax.broadcasted_iota(jnp.int32, (tile_n, 1), 0))
        valid = pidx < total_n
        a2 = jnp.where(valid, a2, 0.0)                # padded rows -> h3 == 0
    h3 = jnp.dot(a2.astype(jnp.bfloat16), w3_ref[...],
                 preferred_element_type=jnp.float32)              # (TN, 1024)

    tsum = jnp.sum(h3, axis=0, keepdims=True)
    tsq = jnp.sum(h3 * h3, axis=0, keepdims=True)
    if need_mask:
        tmax = jnp.max(jnp.where(valid, h3, -jnp.inf), axis=0, keepdims=True)
        tmin = jnp.min(jnp.where(valid, h3, jnp.inf), axis=0, keepdims=True)
    else:
        tmax = jnp.max(h3, axis=0, keepdims=True)
        tmin = jnp.min(h3, axis=0, keepdims=True)

    @pl.when(t == 0)
    def _():
        sum_ref[...] = tsum[None]
        sq_ref[...] = tsq[None]
        max_ref[...] = tmax[None]
        min_ref[...] = tmin[None]

    @pl.when(t > 0)
    def _():
        sum_ref[...] += tsum[None]
        sq_ref[...] += tsq[None]
        max_ref[...] = jnp.maximum(max_ref[...], tmax[None])
        min_ref[...] = jnp.minimum(min_ref[...], tmin[None])


# --------------------------------------------------------------------------
# pass 4: BN3 + ReLU + max-pool finalization, FC head (tiny, fully resident)
# --------------------------------------------------------------------------
def head_kernel(a3_ref, c3_ref, max_ref, min_ref,
                wf1_ref, gf1_ref, bef1_ref, wf2_ref, gf2_ref, bef2_ref,
                wf3_ref, bf3_ref, out_ref):
    a3 = a3_ref[...]
    c3 = c3_ref[...]
    # max_n relu(a*h + c) == relu(a*max_n h + c) if a>=0, relu(a*min_n h + c) if a<0
    sel = jnp.where(a3 >= 0.0, max_ref[...], min_ref[...])        # (B, 1024)
    pooled = jnp.maximum(sel * a3 + c3, 0.0)                      # (B, 1024)

    def fc_bn_relu(h, w, gamma, beta):
        z = jnp.dot(h.astype(jnp.bfloat16), w, preferred_element_type=jnp.float32)
        mean = jnp.mean(z, axis=0, keepdims=True)
        var = jnp.mean(jnp.square(z - mean), axis=0, keepdims=True)
        return jnp.maximum((z - mean) * jax.lax.rsqrt(var + EPS) * gamma + beta, 0.0)

    h = fc_bn_relu(pooled, wf1_ref[...], gf1_ref[...], bef1_ref[...])   # (B, 512)
    h = fc_bn_relu(h, wf2_ref[...], gf2_ref[...], bef2_ref[...])        # (B, 256)
    out_ref[...] = (jnp.dot(h, wf3_ref[...], preferred_element_type=jnp.float32)
                    + bf3_ref[...])                                     # (B, OUTP)


# --------------------------------------------------------------------------
# wrapper
# --------------------------------------------------------------------------
def tnet_cls_forward(x, params, affine_dim, *,
                     row_tile_cap=4096, point_tile_cap=1024):
    """x: (B, N, C) float32. Returns (B, affine_dim, affine_dim)."""
    (w1, g1, be1, w2, g2, be2, w3, g3, be3,
     wf1, gf1, bef1, wf2, gf2, bef2, wf3, bf3) = params

    B, N, C = x.shape
    rows = B * N
    count = float(rows)

    # --- tile sizes (sublane-aligned, bounded VMEM footprint) -------------
    TR = min(row_tile_cap, _round_up(rows, 8))       # row tile for passes 1-2
    rows_p = _round_up(rows, TR)
    n_rt = rows_p // TR
    row_mask = rows_p != rows

    TN = min(point_tile_cap, _round_up(N, 8))        # point tile for pass 3
    Np = _round_up(N, TN)
    n_nt = Np // TN
    pt_mask = Np != N

    Cp = _round_up(C, 8)                              # pad tiny K for the MXU

    # --- pad / cast inputs once (bf16 MXU operands, f32 accumulation) ------
    x_flat = x.reshape(rows, C)
    xfb = jnp.zeros((rows_p, Cp), jnp.bfloat16).at[:rows, :C].set(
        x_flat.astype(jnp.bfloat16))
    x3b = jnp.zeros((B, Np, Cp), jnp.bfloat16).at[:, :N, :C].set(
        x.astype(jnp.bfloat16))

    w1p = jnp.zeros((Cp, 64), jnp.float32).at[:C].set(w1)
    w1b = w1p.astype(jnp.bfloat16)
    w2b = w2.astype(jnp.bfloat16)
    w3b = w3.astype(jnp.bfloat16)
    wf1b = wf1.astype(jnp.bfloat16)
    wf2b = wf2.astype(jnp.bfloat16)

    # lane-dense padded fc_3 output
    adim2 = affine_dim * affine_dim
    outp = _round_up(max(adim2, 128), 128)
    wf3p = jnp.zeros((wf3.shape[0], outp), jnp.float32).at[:, :adim2].set(wf3)
    bf3p = jnp.zeros((1, outp), jnp.float32).at[:, :adim2].set(bf3)

    cp_row = pltpu.CompilerParams(dimension_semantics=("parallel",),
                                  vmem_limit_bytes=_VMEM_LIMIT)

    # ---- pass 1: BN1 statistics (per-tile partials) -----------------------
    s1p, q1p = pl.pallas_call(
        stats1_kernel,
        grid=(n_rt,),
        in_specs=[pl.BlockSpec((TR, Cp), lambda i: (i, 0)),
                  pl.BlockSpec((Cp, 64), lambda i: (0, 0))],
        out_specs=[pl.BlockSpec((1, 1, 64), lambda i: (i, 0, 0)),
                   pl.BlockSpec((1, 1, 64), lambda i: (i, 0, 0))],
        out_shape=[jax.ShapeDtypeStruct((n_rt, 1, 64), jnp.float32)] * 2,
        compiler_params=cp_row,
    )(xfb, w1b)
    s1 = jnp.sum(s1p, axis=0)                         # (1, 64)
    q1 = jnp.sum(q1p, axis=0)

    # hoist BN1 affine out of the grid loops; fold scale into conv_1 weights
    a1s, a1c = _bn_affine(s1, q1, g1, be1, count)
    w1ab = (w1p * a1s).astype(jnp.bfloat16)

    # ---- pass 2: BN2 statistics (per-tile partials) ------------------------
    s2p, q2p = pl.pallas_call(
        functools.partial(stats2_kernel, tile_rows=TR, total_rows=rows,
                          need_mask=row_mask),
        grid=(n_rt,),
        in_specs=[pl.BlockSpec((TR, Cp), lambda i: (i, 0)),
                  pl.BlockSpec((Cp, 64), lambda i: (0, 0)),
                  pl.BlockSpec((1, 64), lambda i: (0, 0)),
                  pl.BlockSpec((64, 128), lambda i: (0, 0))],
        out_specs=[pl.BlockSpec((1, 1, 128), lambda i: (i, 0, 0)),
                   pl.BlockSpec((1, 1, 128), lambda i: (i, 0, 0))],
        out_shape=[jax.ShapeDtypeStruct((n_rt, 1, 128), jnp.float32)] * 2,
        compiler_params=cp_row,
    )(xfb, w1ab, a1c, w2b)
    s2 = jnp.sum(s2p, axis=0)                         # (1, 128)
    q2 = jnp.sum(q2p, axis=0)

    a2s, a2c = _bn_affine(s2, q2, g2, be2, count)
    w2ab = (w2 * a2s).astype(jnp.bfloat16)

    # ---- pass 3: conv_3 stats + per-batch running max/min -----------------
    # Batch axis is 'parallel' (per-batch partial accumulators), point-tile
    # axis is the accumulation axis ('arbitrary').
    s3p, q3p, mx3, mn3 = pl.pallas_call(
        functools.partial(conv3_pool_kernel, tile_n=TN, total_n=N,
                          need_mask=pt_mask),
        grid=(B, n_nt),
        in_specs=[pl.BlockSpec((1, TN, Cp), lambda b, t: (b, t, 0)),
                  pl.BlockSpec((Cp, 64), lambda b, t: (0, 0)),
                  pl.BlockSpec((1, 64), lambda b, t: (0, 0)),
                  pl.BlockSpec((64, 128), lambda b, t: (0, 0)),
                  pl.BlockSpec((1, 128), lambda b, t: (0, 0)),
                  pl.BlockSpec((128, 1024), lambda b, t: (0, 0))],
        out_specs=[pl.BlockSpec((1, 1, 1024), lambda b, t: (b, 0, 0)),
                   pl.BlockSpec((1, 1, 1024), lambda b, t: (b, 0, 0)),
                   pl.BlockSpec((1, 1, 1024), lambda b, t: (b, 0, 0)),
                   pl.BlockSpec((1, 1, 1024), lambda b, t: (b, 0, 0))],
        out_shape=[jax.ShapeDtypeStruct((B, 1, 1024), jnp.float32)] * 4,
        compiler_params=pltpu.CompilerParams(
            dimension_semantics=("parallel", "arbitrary"),
            vmem_limit_bytes=_VMEM_LIMIT),
    )(x3b, w1ab, a1c, w2ab, a2c, w3b)

    s3 = jnp.sum(s3p, axis=0)                         # (1, 1024)
    q3 = jnp.sum(q3p, axis=0)
    a3, c3 = _bn_affine(s3, q3, g3, be3, count)

    # ---- pass 4: BN3 + ReLU + max-pool finalization, FC head --------------
    out = pl.pallas_call(
        head_kernel,
        in_specs=[pl.BlockSpec(memory_space=pltpu.MemorySpace.VMEM)] * 12,
        out_specs=pl.BlockSpec(memory_space=pltpu.MemorySpace.VMEM),
        out_shape=jax.ShapeDtypeStruct((B, outp), jnp.float32),
    )(a3, c3, mx3.reshape(B, 1024), mn3.reshape(B, 1024),
      wf1b, gf1, bef1, wf2b, gf2, bef2, wf3p, bf3p)

    return out[:, :adim2].reshape(B, affine_dim, affine_dim)


# --------------------------------------------------------------------------
# synthetic parameters matching TNetCls.__init__ shapes
# --------------------------------------------------------------------------
def init_params(key, input_dim, affine_dim):
    """Conv1d(cin,cout,1) weights stored as (cin,cout); Linear as (fin,fout).

    Conv/fc biases that feed directly into training-mode BatchNorm are omitted:
    the BN mean subtraction cancels them exactly, so the forward output is
    identical. Only fc_3 keeps its bias.
    """
    def linear_w(k, fan_in, fan_out):
        bound = 1.0 / float(fan_in) ** 0.5
        return jax.random.uniform(k, (fan_in, fan_out), jnp.float32, -bound, bound)

    def linear_wb(k, fan_in, fan_out):
        kw, kb = jax.random.split(k)
        bound = 1.0 / float(fan_in) ** 0.5
        w = jax.random.uniform(kw, (fan_in, fan_out), jnp.float32, -bound, bound)
        b = jax.random.uniform(kb, (1, fan_out), jnp.float32, -bound, bound)
        return w, b

    def bn(k, c):
        kg, kb = jax.random.split(k)
        gamma = 1.0 + 0.1 * jax.random.normal(kg, (1, c), jnp.float32)
        beta = 0.1 * jax.random.normal(kb, (1, c), jnp.float32)
        return gamma, beta

    ks = jax.random.split(key, 11)
    w1 = linear_w(ks[0], input_dim, 64);  g1, be1 = bn(ks[1], 64)
    w2 = linear_w(ks[2], 64, 128);        g2, be2 = bn(ks[3], 128)
    w3 = linear_w(ks[4], 128, 1024);      g3, be3 = bn(ks[5], 1024)
    wf1 = linear_w(ks[6], 1024, 512);     gf1, bef1 = bn(ks[7], 512)
    wf2 = linear_w(ks[8], 512, 256);      gf2, bef2 = bn(ks[9], 256)
    wf3, bf3 = linear_wb(ks[10], 256, affine_dim * affine_dim)
    return (w1, g1, be1, w2, g2, be2, w3, g3, be3,
            wf1, gf1, bef1, wf2, gf2, bef2, wf3, bf3)


if __name__ == "__main__":
    B, N = 2, 16
    input_dim, affine_dim = 3, 3

    key = jax.random.PRNGKey(0)
    kx, kp = jax.random.split(key)
    x = jax.random.normal(kx, (B, N, input_dim), jnp.float32)   # point cloud (B, N, C)
    params = init_params(kp, input_dim, affine_dim)

    out = tnet_cls_forward(x, params, affine_dim)
    jax.block_until_ready(out)
    assert out.shape == (B, affine_dim, affine_dim)
    assert bool(jnp.all(jnp.isfinite(out)))
    print("KERNEL_OK")
</pallas_src>

<mosaic_0001>
module attributes {stable_mosaic.version = 11 : i64} {
  func.func @stats1_kernel(%arg0: i32, %arg1: memref<32x8xbf16, #tpu.memory_space<vmem>>, %arg2: memref<8x64xbf16, #tpu.memory_space<vmem>>, %arg3: memref<1x1x64xf32, #tpu.memory_space<vmem>>, %arg4: memref<1x1x64xf32, #tpu.memory_space<vmem>>) attributes {dimension_semantics = [#tpu.dimension_semantics<parallel>], iteration_bounds = array<i64: 1>, scalar_prefetch = 0 : i64, scratch_operands = 0 : i64, tpu.core_type = #tpu.core_type<tc>, window_params = [{transform_indices = @transform_0, window_bounds = array<i64: 32, 8>}, {pipeline_mode = #tpu.pipeline_mode<synchronous>, transform_indices = @transform_1, window_bounds = array<i64: 8, 64>}, {transform_indices = @transform_2, window_bounds = array<i64: 1, 1, 64>}, {transform_indices = @transform_3, window_bounds = array<i64: 1, 1, 64>}]} {
    %c0 = arith.constant 0 : index
    %c0_0 = arith.constant 0 : index
    %0 = vector.load %arg1[%c0, %c0_0] : memref<32x8xbf16, #tpu.memory_space<vmem>>, vector<32x8xbf16>
    %c0_1 = arith.constant 0 : index
    %c0_2 = arith.constant 0 : index
    %1 = vector.load %arg2[%c0_1, %c0_2] : memref<8x64xbf16, #tpu.memory_space<vmem>>, vector<8x64xbf16>
    %cst = arith.constant dense<0.000000e+00> : vector<32x64xf32>
    %2 = tpu.matmul %0, %1, %cst {dimension_numbers = #tpu.dot_dimension_numbers<[1], [0], [0], [1], [0, 0, 1, 1], [], []>} : vector<32x8xbf16>, vector<8x64xbf16>, vector<32x64xf32> -> vector<32x64xf32>
    %cst_3 = arith.constant dense<0.000000e+00> : vector<64xf32>
    %3 = vector.multi_reduction <add>, %2, %cst_3 [0] : vector<32x64xf32> to vector<64xf32>
    %4 = vector.shape_cast %3 : vector<64xf32> to vector<1x64xf32>
    %5 = vector.shape_cast %4 : vector<1x64xf32> to vector<1x1x64xf32>
    %c0_4 = arith.constant 0 : index
    %c0_5 = arith.constant 0 : index
    %c0_6 = arith.constant 0 : index
    %6 = vector.load %arg3[%c0_4, %c0_5, %c0_6] : memref<1x1x64xf32, #tpu.memory_space<vmem>>, vector<1x1x64xf32>
    tpu.vector_store %arg3[%c0_4, %c0_5, %c0_6], %5 {strides = array<i32>} : memref<1x1x64xf32, #tpu.memory_space<vmem>>, vector<1x1x64xf32>,
    %7 = arith.mulf %2, %2 : vector<32x64xf32>
    %cst_7 = arith.constant dense<0.000000e+00> : vector<64xf32>
    %8 = vector.multi_reduction <add>, %7, %cst_7 [0] : vector<32x64xf32> to vector<64xf32>
    %9 = vector.shape_cast %8 : vector<64xf32> to vector<1x64xf32>
    %10 = vector.shape_cast %9 : vector<1x64xf32> to vector<1x1x64xf32>
    %c0_8 = arith.constant 0 : index
    %c0_9 = arith.constant 0 : index
    %c0_10 = arith.constant 0 : index
    %11 = vector.load %arg4[%c0_8, %c0_9, %c0_10] : memref<1x1x64xf32, #tpu.memory_space<vmem>>, vector<1x1x64xf32>
    tpu.vector_store %arg4[%c0_8, %c0_9, %c0_10], %10 {strides = array<i32>} : memref<1x1x64xf32, #tpu.memory_space<vmem>>, vector<1x1x64xf32>,
    return
  }
  func.func @transform_0(%arg0: i32) -> (i32, i32) {
    %c0_i32 = arith.constant 0 : i32
    %c0_i32_0 = arith.constant 0 : i32
    return %arg0, %c0_i32 : i32, i32
  }
  func.func @transform_1(%arg0: i32) -> (i32, i32) {
    %c0_i32 = arith.constant 0 : i32
    %c0_i32_0 = arith.constant 0 : i32
    %c0_i32_1 = arith.constant 0 : i32
    return %c0_i32, %c0_i32_0 : i32, i32
  }
  func.func @transform_2(%arg0: i32) -> (i32, i32, i32) {
    %c0_i32 = arith.constant 0 : i32
    %c0_i32_0 = arith.constant 0 : i32
    %c0_i32_1 = arith.constant 0 : i32
    return %arg0, %c0_i32, %c0_i32_0 : i32, i32, i32
  }
  func.func @transform_3(%arg0: i32) -> (i32, i32, i32) {
    %c0_i32 = arith.constant 0 : i32
    %c0_i32_0 = arith.constant 0 : i32
    %c0_i32_1 = arith.constant 0 : i32
    return %arg0, %c0_i32, %c0_i32_0 : i32, i32, i32
  }
}

</mosaic_0001>

<llo_original>
// kernel: tpu_custom_call.1
$region0: #{tpu_custom_call.1}
  #allocation0 [shape = 'u32[]', space=smem, size = 0x4, offset = 0x4, fixed_abs, tag = 'smem constant byte address 0x4 - core index']
  #allocation1 [shape = 'u32[144,128]{1,0:T(1,128)}', space=vmem, size = 0x12000, scoped, tag = 'internal scratch']
  %s0 = inlined_call_operand.vmem [shape: bf16[32,8], index: 0, kind: input, shape index: {}]
  %s1 = inlined_call_operand.vmem [shape: bf16[8,64], index: 1, kind: input, shape index: {}]
  %s2 = inlined_call_operand.hbm [shape: f32[1,1,64], index: 2, kind: output, shape index: {0}]
  %s3 = inlined_call_operand.hbm [shape: f32[1,1,64], index: 3, kind: output, shape index: {1}]
  %4 = xla_tuple %s2, %s3
  %s5 = sld [smem:[#allocation0]]
  $region26: #{tpu_custom_call.1} parent=0
    _
  %s7 = ssub.s32 1, %s5
  %s8 = scalar_select 0, %s7, %s5
  $region1: #{tpu_custom_call.1} parent=0
    #allocation2 [shape = 'u8[512]{0}', space=vmem, size = 0x400, scoped, tag = 'output window, operand 0, single buffered']
    #allocation3 [shape = 's32[1]{0}', space=sflag, size = 0x4, scoped, tag = 'scoped memory for tpu_custom_call.1']
    #allocation4 [shape = 'u8[512]{0}', space=vmem, size = 0x400, scoped, tag = 'output window, operand 1, single buffered']
    #allocation5 [shape = 's32[1]{0}', space=sflag, size = 0x4, scoped, tag = 'scoped memory for tpu_custom_call.1']
    %9 = vsyncpa [#allocation3], 0
    %10 = vsyncpa [#allocation5], 0
    // Predicated region
    $region2: #{tpu_custom_call.1} parent=1 // pred_check
      _
    $region3: #{tpu_custom_call.1} parent=1 // pred_check_branch
      %12 = sbr.rel (0) target = $region5
    $region4: #{tpu_custom_call.1} parent=1 // pred_region
      _
    $region5: #{tpu_custom_call.1} parent=1 // pred_fallthru
      _
    // Predicated region
    $region6: #{tpu_custom_call.1} parent=1 // pred_check
      _
    $region7: #{tpu_custom_call.1} parent=1 // pred_check_branch
      %14 = sbr.rel (0) target = $region9
    $region8: #{tpu_custom_call.1} parent=1 // pred_region
      _
    $region9: #{tpu_custom_call.1} parent=1 // pred_fallthru
      _
    %v16 = vld [vmem:[%s0] sm:$0xf]
    %v17 = vld [vmem:[%s0 + $0x4] sm:$0xf]
    %v18 = vld [vmem:[%s0 + $0x8] sm:$0xf]
    %v19 = vld [vmem:[%s0 + $0xc] sm:$0xf]
    %v20 = vld [vmem:[%s1] sm:$0xf]
    %v25 = vunpack.c.l.b16 %v16
    %v26 = vunpack.c.l.b16 %v17
    %v27 = vunpack.c.l.b16 %v18
    %v28 = vunpack.c.l.b16 %v19
    %v29 = vpack.c.b16 %v26, %v25
    %v30 = vpack.c.b16 %v28, %v27
    %vm31 = vcmask 64512
    %v33 = vsel %vm31, %v29, 0
    %v36 = vsel %vm31, %v30, 0
    %vm38 = vcmask 1043456
    %v40 = vsel %vm38, %v20, 0
    %42 = vmatprep.subr.bf16.mxu0 0
    %43 = vmatpush1.bf16.msra.mxu0 %v40
    %44 = vmatprep.subr.bf16.mxu0 0
    %45 = vmatpush1.bf16.msra.mxu0 0
    %46 = vmatprep.subr.bf16.mxu0 0
    %47 = vmatpush1.bf16.msra.mxu0 0
    %48 = vmatprep.subr.bf16.mxu0 0
    %49 = vmatpush1.bf16.msra.mxu0 0
    %50 = vmatprep.subr.bf16.mxu0 0
    %51 = vmatpush1.bf16.msra.mxu0 0
    %52 = vmatprep.subr.bf16.mxu0 0
    %53 = vmatpush1.bf16.msra.mxu0 0
    %54 = vmatprep.subr.bf16.mxu0 0
    %55 = vmatpush1.bf16.msra.mxu0 0
    %56 = vmatprep.subr.bf16.mxu0 0
    %57 = vmatpush1.bf16.msra.mxu0 0
    %58 = vmatprep.subr.bf16.mxu0 0
    %59 = vmatpush1.bf16.msra.mxu0 0
    %60 = vmatprep.subr.bf16.mxu0 0
    %61 = vmatpush1.bf16.msra.mxu0 0
    %62 = vmatprep.subr.bf16.mxu0 0
    %63 = vmatpush1.bf16.msra.mxu0 0
    %64 = vmatprep.subr.bf16.mxu0 0
    %65 = vmatpush1.bf16.msra.mxu0 0
    %66 = vmatprep.subr.bf16.mxu0 0
    %67 = vmatpush1.bf16.msra.mxu0 0
    %68 = vmatprep.subr.bf16.mxu0 0
    %69 = vmatpush1.bf16.msra.mxu0 0
    %70 = vmatprep.subr.bf16.mxu0 0
    %71 = vmatpush1.bf16.msra.mxu0 0
    %72 = vmatprep.subr.bf16.mxu0 0
    %73 = vmatpush1.bf16.msra.mxu0 0
    %74 = vmatprep.mubr.bf16.mxu0 0
    %75 = vmatmul.mubr.bf16.gmra.mrb[0].mxu0 %v33
    %v76 = vpop.f32.mrb[0].mxu0
    %v77 = vadd.f32 0.0, %v76
    %v78 = vpop.f32.mrb[0].mxu0
    %v79 = vpop.f32.mrb[0].mxu0
    %v80 = vadd.f32 0.0, %v79
    %v81 = vpop.f32.mrb[0].mxu0
    %82 = vmatprep.mubr.bf16.mxu0 0
    %83 = vmatmul.mubr.bf16.gmra.mrb[0].mxu0 %v36
    %v84 = vpop.f32.mrb[0].mxu0
    %v85 = vadd.f32 0.0, %v84
    %v86 = vpop.f32.mrb[0].mxu0
    %v87 = vpop.f32.mrb[0].mxu0
    %v88 = vadd.f32 0.0, %v87
    %v89 = vpop.f32.mrb[0].mxu0
    %90 = vdwg.mxu0
    %vm91 = vcmask 523264
    %v92 = vsel %vm91, %v77, 0.0
    %v93 = vsel %vm91, %v80, 0.0
    %v94 = vadd.f32 %v92, %v93
    %v95 = vsel %vm91, %v85, 0.0
    %v96 = vadd.f32 %v94, %v95
    %v97 = vsel %vm91, %v88, 0.0
    %v98 = vadd.f32 %v96, %v97
    %v99 = vrot.slane %v98, 4
    %v100 = vadd.f32 %v98, %v99
    %v101 = vrot.slane %v100, 2
    %v102 = vadd.f32 %v100, %v101
    %v103 = vrot.slane %v102, 1
    %v104 = vadd.f32 %v102, %v103
    %vm105 = vcmask 516096
    %106 = vst.msk [vmem:[#allocation2] sm:$0x1] %vm105, %v104
    %v107 = vmul.f32 %v77, %v77
    %v108 = vmul.f32 %v80, %v80
    %v109 = vmul.f32 %v85, %v85
    %v110 = vmul.f32 %v88, %v88
    %v111 = vsel %vm91, %v107, 0.0
    %v112 = vsel %vm91, %v108, 0.0
    %v113 = vadd.f32 %v111, %v112
    %v114 = vsel %vm91, %v109, 0.0
    %v115 = vadd.f32 %v113, %v114
    %v116 = vsel %vm91, %v110, 0.0
    %v117 = vadd.f32 %v115, %v116
    %v118 = vrot.slane %v117, 4
    %v119 = vadd.f32 %v117, %v118
    %v120 = vrot.slane %v119, 2
    %v121 = vadd.f32 %v119, %v120
    %v122 = vrot.slane %v121, 1
    %v123 = vadd.f32 %v121, %v122
    %124 = vst.msk [vmem:[#allocation4] sm:$0x1] %vm105, %v123
    // Predicated region
    $region10: #{tpu_custom_call.1} parent=1 // pred_check
      _
    $region11: #{tpu_custom_call.1} parent=1 // pred_check_branch
      %126 = sbr.rel (0) target = $region13
    $region12: #{tpu_custom_call.1} parent=1 // pred_region
      %s128 = ssub.s32 16, 16
      %129 = vsyncadd [#allocation3], %s128
      %s131 = sshll.u32 [#allocation2], 4
      %s132 = int_to_ptr.vmem [resolvable:$true] %s131
      %134 = dma.vmem_to_hbm [thread:$0]  %s132, 16, %s2, [#allocation3]
    $region13: #{tpu_custom_call.1} parent=1 // pred_fallthru
      _
    // Predicated region
    $region14: #{tpu_custom_call.1} parent=1 // pred_check
      _
    $region15: #{tpu_custom_call.1} parent=1 // pred_check_branch
      %136 = sbr.rel (0) target = $region17
    $region16: #{tpu_custom_call.1} parent=1 // pred_region
      %s138 = ssub.s32 16, 16
      %139 = vsyncadd [#allocation5], %s138
      %s141 = sshll.u32 [#allocation4], 4
      %s142 = int_to_ptr.vmem [resolvable:$true] %s141
      %144 = dma.vmem_to_hbm [thread:$0]  %s142, 16, %s3, [#allocation5]
    $region17: #{tpu_custom_call.1} parent=1 // pred_fallthru
      _
    // Predicated region
    $region18: #{tpu_custom_call.1} parent=1 // pred_check
      _
    $region19: #{tpu_custom_call.1} parent=1 // pred_check_branch
      %146 = sbr.rel (0) target = $region21
    $region20: #{tpu_custom_call.1} parent=1 // pred_region
      %147 = dma.done [#allocation3], 16
    $region21: #{tpu_custom_call.1} parent=1 // pred_fallthru
      _
    // Predicated region
    $region22: #{tpu_custom_call.1} parent=1 // pred_check
      _
    $region23: #{tpu_custom_call.1} parent=1 // pred_check_branch
      %149 = sbr.rel (0) target = $region25
    $region24: #{tpu_custom_call.1} parent=1 // pred_region
      %150 = dma.done [#allocation5], 16
    $region25: #{tpu_custom_call.1} parent=1 // pred_fallthru
      _
    %151 = vsyncpa [#allocation3], 1
    %152 = vsyncpa [#allocation5], 1

</llo_original>
